<compile_context>
chip_gen: v7x
topology: tpu7x:2x2x1
jax: 0.10.0
libtpu: 0.0.40
codegen_flags: <defaults>
</compile_context>

<pallas_src>
import jax
import jax.numpy as jnp
from jax.experimental import pallas as pl
from jax.experimental.pallas import tpu as pltpu


def _super_gaussian_kernel(c_ref, x_ref, o_ref):
    # c_ref: (1,) f32 in SMEM holding c = -b / (2*a^2); x_ref/o_ref: VMEM tiles.
    c = c_ref[0]
    x = x_ref[...].astype(jnp.float32)
    # exp(-x^2/(2a^2))**b  ==  exp(c * x^2)  with c folded in the wrapper.
    o_ref[...] = jnp.exp((x * x) * c).astype(o_ref.dtype)


def _generation_config():
    """Returns (max_tile_bytes_f32, vmem_limit_bytes) for the local TPU gen."""
    kind = ""
    try:
        kind = jax.devices()[0].device_kind.lower()
    except Exception:
        pass
    if "v5 lite" in kind or "v5e" in kind or "v5lite" in kind:
        # 2 MiB f32 tiles -> ~8 MiB double-buffered in+out working set,
        # fits v5e's 16 MiB scoped-VMEM default.
        return 2 << 20, None
    if "v6" in kind:
        # 4 MiB f32 tiles -> ~16 MiB working set, fits v6e's 32 MiB default.
        return 4 << 20, None
    if "v7" in kind or "tpu7" in kind:
        # 4 MiB f32 tiles; raise the scoped limit but stay well under the
        # 64 MiB per-TC physical VMEM.
        return 4 << 20, 48 << 20
    # Unknown chip: conservative sizing that is safe on every generation.
    return 2 << 20, None


def _pick_tile_rows(rows, max_tile_rows):
    """Largest multiple-of-8 divisor of `rows` that is <= max_tile_rows,
    preferring one that still yields >= 2 grid steps (megacore / pipelining).
    Returns None when only pathologically small tiles would result (the
    caller then falls back to the padded path)."""
    if rows <= max_tile_rows and rows < 16:
        return rows  # tiny input: one full-extent block
    start = (min(max_tile_rows, rows) // 8) * 8
    chosen = None
    for t in range(start, 0, -8):
        if rows % t == 0:
            if rows // t >= 2:
                chosen = t
                break
            if chosen is None:
                chosen = t  # grid == 1 fallback (whole array in one tile)
    if chosen is None:
        return rows if rows <= max_tile_rows else None
    # Guard against factorisations with huge prime factors that would
    # fragment the copy into thousands of tiny per-step DMAs.
    ideal_steps = pl.cdiv(rows, max_tile_rows)
    if rows // chosen > 8 * max(2, ideal_steps):
        return None
    return chosen


def _choose_tiling(n, max_tile_bytes):
    """Pick (lanes, rows, tile_rows, padded_n) for n flat elements."""
    # Preferred: pad-free lane-dense factorisation.
    for lanes in (1024, 512, 256, 128):
        if n % lanes == 0:
            rows = n // lanes
            max_tile_rows = max(8, max_tile_bytes // (lanes * 4))
            tile_rows = _pick_tile_rows(rows, max_tile_rows)
            if tile_rows is not None:
                return lanes, rows, tile_rows, n
    # Last resort: minimal pad (only for sizes with no 128-aligned
    # factorisation, or pathological ones).
    lanes = 1024 if n >= 8 * 1024 else 128
    max_tile_rows = max(8, max_tile_bytes // (lanes * 4))
    rows_needed = pl.cdiv(n, lanes)
    tile_rows = min(max_tile_rows, max(8, ((rows_needed + 7) // 8) * 8))
    if (pl.cdiv(rows_needed, tile_rows) < 2 and tile_rows >= 16
            and (tile_rows // 2) % 8 == 0 and rows_needed > tile_rows // 2):
        tile_rows //= 2  # give the grid at least 2 steps
    rows = pl.cdiv(rows_needed, tile_rows) * tile_rows
    return lanes, rows, tile_rows, rows * lanes


def super_gaussian_activation(x, a, b):
    """Applies f(x) = exp(-x^2/(2 a^2))^b elementwise via a Pallas TPU kernel.

    x: arbitrary-shaped float array (e.g. NCHW).
    a, b: shape-(1,) float parameters.
    """
    orig_shape = x.shape
    orig_dtype = x.dtype

    flat = x.reshape(-1)
    n = flat.shape[0]

    max_tile_bytes, vmem_limit_bytes = _generation_config()
    lanes, rows, tile_rows, padded = _choose_tiling(n, max_tile_bytes)

    if padded != n:
        # Rare path (non-128-aligned element counts only).
        flat = jnp.pad(flat, (0, padded - n))
    x2d = flat.reshape(rows, lanes)

    # Fold both parameters into a single scalar once, in the wrapper:
    #   exp(-x^2/(2a^2))**b == exp(c * x^2),  c = -b / (2 a^2).
    a_s = jnp.asarray(a, jnp.float32).reshape(-1)
    b_s = jnp.asarray(b, jnp.float32).reshape(-1)
    c = (-b_s / (2.0 * a_s * a_s)).astype(jnp.float32)  # shape (1,)

    grid = (rows // tile_rows,)

    cost = pl.CostEstimate(
        flops=3 * n,
        transcendentals=n,
        bytes_accessed=2 * n * x.dtype.itemsize,
    )

    out2d = pl.pallas_call(
        _super_gaussian_kernel,
        out_shape=jax.ShapeDtypeStruct((rows, lanes), orig_dtype),
        grid_spec=pl.GridSpec(
            grid=grid,
            in_specs=[
                pl.BlockSpec(memory_space=pltpu.MemorySpace.SMEM),  # [c]
                pl.BlockSpec((tile_rows, lanes), lambda i: (i, 0)),
            ],
            out_specs=pl.BlockSpec((tile_rows, lanes), lambda i: (i, 0)),
        ),
        compiler_params=pltpu.CompilerParams(
            dimension_semantics=("parallel",),
            vmem_limit_bytes=vmem_limit_bytes,
        ),
        cost_estimate=cost,
    )(c, x2d)

    out = out2d.reshape(-1)
    if padded != n:
        out = out[:n]
    return out.reshape(orig_shape)


if __name__ == "__main__":
    key = jax.random.PRNGKey(0)

    # Deterministic parameters (module defaults are a=1, b=1; use slightly
    # non-trivial values to exercise the math).
    a_param = jnp.ones((1,), jnp.float32) * 1.5
    b_param = jnp.ones((1,), jnp.float32) * 2.0

    def ref_fn(x):
        # Literal PyTorch formula: pow of exp.
        return jnp.exp(-(x.astype(jnp.float32) ** 2)
                       / (2.0 * a_param[0] ** 2)) ** b_param[0]

    # 1) Small NCHW-like input (128-aligned element count -> pad-free path).
    k1, k2, k3 = jax.random.split(key, 3)
    x1 = jax.random.normal(k1, (2, 4, 16, 16), dtype=jnp.float32)
    y1 = jax.block_until_ready(super_gaussian_activation(x1, a_param, b_param))
    assert y1.shape == x1.shape and y1.dtype == x1.dtype
    assert jnp.allclose(y1, ref_fn(x1), atol=1e-5, rtol=1e-5)

    # 2) Misaligned element count (exercises the pad fallback path).
    x2 = jax.random.normal(k2, (2, 3, 10, 13), dtype=jnp.float32)
    y2 = jax.block_until_ready(super_gaussian_activation(x2, a_param, b_param))
    assert y2.shape == x2.shape and y2.dtype == x2.dtype
    assert jnp.allclose(y2, ref_fn(x2), atol=1e-5, rtol=1e-5)

    # 3) bf16 I/O is preserved (compute in f32, output cast back to bf16).
    x3 = jax.random.normal(k3, (2, 4, 16, 16), dtype=jnp.bfloat16)
    y3 = jax.block_until_ready(super_gaussian_activation(x3, a_param, b_param))
    assert y3.shape == x3.shape and y3.dtype == x3.dtype
    assert jnp.allclose(y3.astype(jnp.float32), ref_fn(x3), atol=2e-2, rtol=2e-2)

    print("KERNEL_OK")
</pallas_src>

<mosaic_0001>
module attributes {stable_mosaic.version = 11 : i64} {
  func.func @_super_gaussian_kernel(%arg0: i32, %arg1: memref<1xf32, #tpu.memory_space<smem>>, %arg2: memref<2x1024xf32, #tpu.memory_space<vmem>>, %arg3: memref<2x1024xf32, #tpu.memory_space<vmem>>) attributes {dimension_semantics = [#tpu.dimension_semantics<parallel>], iteration_bounds = array<i64: 1>, scalar_prefetch = 0 : i64, scratch_operands = 0 : i64, tpu.core_type = #tpu.core_type<tc>, window_params = [{transform_indices = @transform_0, window_bounds = array<i64: 1>}, {transform_indices = @transform_1, window_bounds = array<i64: 2, 1024>}, {transform_indices = @transform_2, window_bounds = array<i64: 2, 1024>}]} {
    %c0 = arith.constant 0 : index
    %0 = memref.load %arg1[%c0] : memref<1xf32, #tpu.memory_space<smem>>
    %c0_0 = arith.constant 0 : index
    %c0_1 = arith.constant 0 : index
    %1 = vector.load %arg2[%c0_0, %c0_1] : memref<2x1024xf32, #tpu.memory_space<vmem>>, vector<2x1024xf32>
    %2 = arith.mulf %1, %1 : vector<2x1024xf32>
    %3 = vector.broadcast %0 : f32 to vector<2x1024xf32>
    %4 = arith.mulf %2, %3 : vector<2x1024xf32>
    %5 = math.exp %4 : vector<2x1024xf32>
    %c0_2 = arith.constant 0 : index
    %c0_3 = arith.constant 0 : index
    %6 = vector.load %arg3[%c0_2, %c0_3] : memref<2x1024xf32, #tpu.memory_space<vmem>>, vector<2x1024xf32>
    tpu.vector_store %arg3[%c0_2, %c0_3], %5 {strides = array<i32>} : memref<2x1024xf32, #tpu.memory_space<vmem>>, vector<2x1024xf32>,
    return
  }
  func.func @transform_0(%arg0: i32) -> i32 {
    %c0_i32 = arith.constant 0 : i32
    %c0_i32_0 = arith.constant 0 : i32
    return %c0_i32 : i32
  }
  func.func @transform_1(%arg0: i32) -> (i32, i32) {
    %c0_i32 = arith.constant 0 : i32
    %c0_i32_0 = arith.constant 0 : i32
    return %arg0, %c0_i32 : i32, i32
  }
  func.func @transform_2(%arg0: i32) -> (i32, i32) {
    %c0_i32 = arith.constant 0 : i32
    %c0_i32_0 = arith.constant 0 : i32
    return %arg0, %c0_i32 : i32, i32
  }
}

</mosaic_0001>

<llo_original>
// kernel: tpu_custom_call.1
$region0: #{tpu_custom_call.1}
  #allocation0 [shape = 'u32[]', space=smem, size = 0x4, offset = 0x4, fixed_abs, tag = 'smem constant byte address 0x4 - core index']
  #allocation1 [shape = 'u32[144,128]{1,0:T(1,128)}', space=vmem, size = 0x12000, scoped, tag = 'internal scratch']
  #allocation2 [shape = 'f32[1]{0:T(128)S(6)}', space=smem, size = 0x200, scoped, tag = 'scoped memory for tpu_custom_call.1']
  %s0 = inlined_call_operand.<no memory space> [shape: f32[1], index: 0, kind: input, shape index: {}]
  %s1 = inlined_call_operand.hbm [shape: f32[2,1024], index: 1, kind: input, shape index: {}]
  %s2 = inlined_call_operand.hbm [shape: f32[2,1024], index: 2, kind: output, shape index: {}]
  %s3 = sld [smem:[#allocation0]]
  $region22: #{tpu_custom_call.1} parent=0
    _
  %s5 = ssub.s32 1, %s3
  %s6 = scalar_select 0, %s5, %s3
  %7 = sst [smem:[#allocation2]] %s0
  $region1: #{tpu_custom_call.1} parent=0
    #allocation3 [shape = 'u8[8192]{0}', space=vmem, size = 0x2000, scoped, tag = 'input window, operand 1, single buffered']
    #allocation4 [shape = 's32[1]{0}', space=sflag, size = 0x4, scoped, tag = 'scoped memory for tpu_custom_call.1']
    #allocation5 [shape = 's32[1]{0}', space=sflag, size = 0x4, scoped, tag = 'scoped memory for tpu_custom_call.1']
    #allocation6 [shape = 'u8[8192]{0}', space=vmem, size = 0x2000, scoped, tag = 'output window, operand 0, single buffered']
    %8 = vsyncpa [#allocation4], 0
    %9 = vsyncpa [#allocation5], 0
    // Predicated region
    $region2: #{tpu_custom_call.1} parent=1 // pred_check
      _
    $region3: #{tpu_custom_call.1} parent=1 // pred_check_branch
      %11 = sbr.rel (0) target = $region5
    $region4: #{tpu_custom_call.1} parent=1 // pred_region
      _
    $region5: #{tpu_custom_call.1} parent=1 // pred_fallthru
      _
    // Predicated region
    $region6: #{tpu_custom_call.1} parent=1 // pred_check
      _
    $region7: #{tpu_custom_call.1} parent=1 // pred_check_branch
      %13 = sbr.rel (0) target = $region9
    $region8: #{tpu_custom_call.1} parent=1 // pred_region
      %s15 = ssub.s32 256, 256
      %16 = vsyncadd [#allocation4], %s15
      %s18 = sshll.u32 [#allocation3], 4
      %s19 = int_to_ptr.vmem [resolvable:$true] %s18
      %21 = dma.hbm_to_vmem [thread:$0]  %s1, 256, %s19, [#allocation4]
    $region9: #{tpu_custom_call.1} parent=1 // pred_fallthru
      _
    // Predicated region
    $region10: #{tpu_custom_call.1} parent=1 // pred_check
      _
    $region11: #{tpu_custom_call.1} parent=1 // pred_check_branch
      %23 = sbr.rel (0) target = $region13
    $region12: #{tpu_custom_call.1} parent=1 // pred_region
      %24 = dma.done [#allocation4], 256
    $region13: #{tpu_custom_call.1} parent=1 // pred_fallthru
      _
    %s25 = sld [smem:[#allocation2]]
    %v26 = vld [vmem:[#allocation3] sm:$0xff]
    %v27 = vld [vmem:[#allocation3 + $0x8] sm:$0xff]
    %v28 = vmul.f32 %v26, %v26
    %v29 = vmul.f32 %v27, %v27
    %v30 = vstv %s25
    %v31 = vmul.f32 %v28, %v30
    %v32 = vmul.f32 %v29, %v30
    %v33 = vmul.f32 %v31, 1.442695
    %v34 = vpow.pop %v33
    %v35 = vmul.f32 %v32, 1.442695
    %v36 = vpow.pop %v35
    %37 = vst [vmem:[#allocation6] sm:$0xff] %v34
    %38 = vst [vmem:[#allocation6 + $0x8] sm:$0xff] %v36
    // Predicated region
    $region14: #{tpu_custom_call.1} parent=1 // pred_check
      _
    $region15: #{tpu_custom_call.1} parent=1 // pred_check_branch
      %40 = sbr.rel (0) target = $region17
    $region16: #{tpu_custom_call.1} parent=1 // pred_region
      %s42 = ssub.s32 256, 256
      %43 = vsyncadd [#allocation5], %s42
      %s45 = sshll.u32 [#allocation6], 4
      %s46 = int_to_ptr.vmem [resolvable:$true] %s45
      %48 = dma.vmem_to_hbm [thread:$0]  %s46, 256, %s2, [#allocation5]
    $region17: #{tpu_custom_call.1} parent=1 // pred_fallthru
      _
    // Predicated region
    $region18: #{tpu_custom_call.1} parent=1 // pred_check
      _
    $region19: #{tpu_custom_call.1} parent=1 // pred_check_branch
      %50 = sbr.rel (0) target = $region21
    $region20: #{tpu_custom_call.1} parent=1 // pred_region
      %51 = dma.done [#allocation5], 256
    $region21: #{tpu_custom_call.1} parent=1 // pred_fallthru
      _
    %52 = vsyncpa [#allocation4], 1
    %53 = vsyncpa [#allocation5], 1

</llo_original>
